<compile_context>
chip_gen: v5e
topology: v5e:2x2
jax: 0.10.0
libtpu: 0.0.40
codegen_flags: <defaults>
</compile_context>

<pallas_src>
import math

import jax
import jax.numpy as jnp
from jax import lax
from jax.experimental import pallas as pl
from jax.experimental.pallas import tpu as pltpu


def _attention_kernel(q_ref, k_ref, v_ref, mask_ref, o_ref):
    # Block shapes: q (1, tq, D), k/v (1, S, D), mask (1, tq, S), out (1, tq, D).
    d = q_ref.shape[-1]
    scale = 1.0 / math.sqrt(d)

    # Fold the 1/sqrt(d) scale into Q (small: tq*D) and keep the MXU on bf16.
    q = (q_ref[0].astype(jnp.float32) * scale).astype(jnp.bfloat16)   # (tq, D)
    k = k_ref[0]                                                      # (S, D) bf16
    m = mask_ref[0].astype(jnp.float32)                               # (tq, S)

    # qk = (Q*scale) @ K^T + mask — contraction on the last dims, no K transpose.
    qk = lax.dot_general(
        q, k,
        dimension_numbers=(((1,), (1,)), ((), ())),
        preferred_element_type=jnp.float32,
    ) + m                                                             # (tq, S) f32

    # Numerically-stable softmax; normalization deferred past the PV matmul.
    qk_max = jnp.max(qk, axis=-1, keepdims=True)
    p = jnp.exp(qk - qk_max)                                          # (tq, S) f32
    denom = jnp.sum(p, axis=-1, keepdims=True)                        # (tq, 1)

    out = jnp.dot(p.astype(jnp.bfloat16), v_ref[0],
                  preferred_element_type=jnp.float32)                 # (tq, D) f32
    out = out * pl.reciprocal(denom, approx=True)                     # EUP recip, tq*D mul
    o_ref[0] = out.astype(o_ref.dtype)


def _pick_tq(S):
    """Largest query tile s.t. the (tq, S) f32 intermediates stay ~vreg-sized."""
    if S * S <= 16384 or S % 8 != 0:
        return S                      # whole sequence per step (tiny problems)
    budget = max(8, 16384 // S)
    for cand in range(min(budget, S) // 8 * 8, 7, -8):
        if S % cand == 0:
            return cand
    return S


def attention(q, k, v, mask, *, tq=None):
    """q, k, v: (B, S, D); mask: (1, S, S).  Returns (B, S, D) in q.dtype."""
    B, S, D = q.shape
    assert k.shape == (B, S, D) and v.shape == (B, S, D)
    assert mask.shape == (1, S, S)

    if tq is None:
        tq = _pick_tq(S)
    assert S % tq == 0, "query tile must divide sequence length"
    n_q = S // tq

    out_dtype = q.dtype
    # bf16 at the boundary: halves HBM read bytes for Q/K/V and (especially) the
    # B-broadcast mask, and avoids any in-kernel re-cast of the resident K/V.
    qb = q.astype(jnp.bfloat16)
    kb = k.astype(jnp.bfloat16)
    vb = v.astype(jnp.bfloat16)
    mb = mask.astype(jnp.bfloat16)    # 0 / -1e9 entries survive bf16 fine

    return pl.pallas_call(
        _attention_kernel,
        out_shape=jax.ShapeDtypeStruct((B, S, D), out_dtype),
        grid_spec=pltpu.PrefetchScalarGridSpec(
            num_scalar_prefetch=0,
            # qi outer, batch inner: the (tq, S) mask block index is constant
            # across the inner axis, so it is fetched once per qi, not per (b, qi).
            grid=(n_q, B),
            in_specs=[
                pl.BlockSpec((1, tq, D), lambda qi, b: (b, qi, 0)),   # Q tile
                pl.BlockSpec((1, S, D), lambda qi, b: (b, 0, 0)),     # K (full seq)
                pl.BlockSpec((1, S, D), lambda qi, b: (b, 0, 0)),     # V (full seq)
                pl.BlockSpec((1, tq, S), lambda qi, b: (0, qi, 0)),   # mask rows (batch-broadcast)
            ],
            out_specs=pl.BlockSpec((1, tq, D), lambda qi, b: (b, qi, 0)),
        ),
        compiler_params=pltpu.CompilerParams(
            dimension_semantics=("parallel", "parallel"),
        ),
        # TODO(synk): for S >~ 512 (where (tq,S) intermediates and resident K/V
        # outgrow vregs / v7x's 64 MiB VMEM), switch to a flash-style kv grid
        # axis with online softmax and set vmem_limit_bytes explicitly.
    )(qb, kb, vb, mb)


def attention_ref(q, k, v, mask):
    """Pure-JAX f32 reference for correctness checking."""
    d = q.shape[-1]
    qk = jnp.einsum("bqd,bkd->bqk", q, k) / math.sqrt(d) + mask
    attn = jax.nn.softmax(qk, axis=-1)
    return jnp.einsum("bqk,bkd->bqd", attn, v)


if __name__ == "__main__":
    # Shapes consistent with the module: mask is (1, 56, 56) -> S = 56.
    # batch=2, head_dim=64.
    B, S, D = 2, 56, 64
    key = jax.random.PRNGKey(0)
    kq, kk, kv, km = jax.random.split(key, 4)

    Q7 = jax.random.normal(kq, (B, S, D), dtype=jnp.float32)
    KK7 = jax.random.normal(kk, (B, S, D), dtype=jnp.float32)
    VV3 = jax.random.normal(kv, (B, S, D), dtype=jnp.float32)
    # Deterministic additive mask (large-negative entries, rest zero), shape (1, S, S).
    mask_bits = jax.random.uniform(km, (1, S, S)) > 0.7
    mask = jnp.where(mask_bits, jnp.float32(-1e9), jnp.float32(0.0))

    out = attention(Q7, KK7, VV3, mask)
    out = jax.block_until_ready(out)

    ref = attention_ref(Q7, KK7, VV3, mask)
    assert out.shape == (B, S, D)
    # bf16 MXU operands + bf16 boundary casts + approx reciprocal => relaxed tolerance.
    assert jnp.allclose(out, ref, atol=3e-2, rtol=3e-2), "mismatch vs reference"

    print("KERNEL_OK")
</pallas_src>

<mosaic_0001>
module attributes {stable_mosaic.version = 11 : i64} {
  func.func @_attention_kernel(%arg0: i32, %arg1: i32, %arg2: memref<1x56x64xbf16, #tpu.memory_space<vmem>>, %arg3: memref<1x56x64xbf16, #tpu.memory_space<vmem>>, %arg4: memref<1x56x64xbf16, #tpu.memory_space<vmem>>, %arg5: memref<1x56x56xbf16, #tpu.memory_space<vmem>>, %arg6: memref<1x56x64xf32, #tpu.memory_space<vmem>>) attributes {dimension_semantics = [#tpu.dimension_semantics<parallel>, #tpu.dimension_semantics<parallel>], iteration_bounds = array<i64: 1, 2>, scalar_prefetch = 0 : i64, scratch_operands = 0 : i64, tpu.core_type = #tpu.core_type<tc>, window_params = [{transform_indices = @transform_0, window_bounds = array<i64: 1, 56, 64>}, {transform_indices = @transform_1, window_bounds = array<i64: 1, 56, 64>}, {transform_indices = @transform_2, window_bounds = array<i64: 1, 56, 64>}, {transform_indices = @transform_3, window_bounds = array<i64: 1, 56, 56>}, {transform_indices = @transform_4, window_bounds = array<i64: 1, 56, 64>}]} {
    %c0 = arith.constant 0 : index
    %c0_0 = arith.constant 0 : index
    %c0_1 = arith.constant 0 : index
    %0 = vector.load %arg2[%c0, %c0_0, %c0_1] : memref<1x56x64xbf16, #tpu.memory_space<vmem>>, vector<1x56x64xbf16>
    %1 = vector.shape_cast %0 : vector<1x56x64xbf16> to vector<56x64xbf16>
    %2 = arith.extf %1 : vector<56x64xbf16> to vector<56x64xf32>
    %cst = arith.constant 1.250000e-01 : f32
    %3 = vector.broadcast %cst : f32 to vector<56x64xf32>
    %4 = arith.mulf %2, %3 : vector<56x64xf32>
    %5 = arith.truncf %4 : vector<56x64xf32> to vector<56x64xbf16>
    %c0_2 = arith.constant 0 : index
    %c0_3 = arith.constant 0 : index
    %c0_4 = arith.constant 0 : index
    %6 = vector.load %arg3[%c0_2, %c0_3, %c0_4] : memref<1x56x64xbf16, #tpu.memory_space<vmem>>, vector<1x56x64xbf16>
    %7 = vector.shape_cast %6 : vector<1x56x64xbf16> to vector<56x64xbf16>
    %c0_5 = arith.constant 0 : index
    %c0_6 = arith.constant 0 : index
    %c0_7 = arith.constant 0 : index
    %8 = vector.load %arg5[%c0_5, %c0_6, %c0_7] : memref<1x56x56xbf16, #tpu.memory_space<vmem>>, vector<1x56x56xbf16>
    %9 = vector.shape_cast %8 : vector<1x56x56xbf16> to vector<56x56xbf16>
    %10 = arith.extf %9 : vector<56x56xbf16> to vector<56x56xf32>
    %cst_8 = arith.constant dense<0.000000e+00> : vector<56x56xf32>
    %11 = tpu.matmul %5, %7, %cst_8 {dimension_numbers = #tpu.dot_dimension_numbers<[1], [1], [0], [0], [0, 0, 1, 0], [], []>} : vector<56x64xbf16>, vector<56x64xbf16>, vector<56x56xf32> -> vector<56x56xf32>
    %12 = arith.addf %11, %10 : vector<56x56xf32>
    %cst_9 = arith.constant dense<0xFF800000> : vector<56xf32>
    %13 = vector.multi_reduction <maximumf>, %12, %cst_9 [1] : vector<56x56xf32> to vector<56xf32>
    %14 = vector.shape_cast %13 : vector<56xf32> to vector<56x1xf32>
    %15 = vector.broadcast %14 : vector<56x1xf32> to vector<56x56xf32>
    %16 = arith.subf %12, %15 : vector<56x56xf32>
    %17 = math.exp %16 : vector<56x56xf32>
    %cst_10 = arith.constant dense<0.000000e+00> : vector<56xf32>
    %18 = vector.multi_reduction <add>, %17, %cst_10 [1] : vector<56x56xf32> to vector<56xf32>
    %19 = vector.shape_cast %18 : vector<56xf32> to vector<56x1xf32>
    %20 = arith.truncf %17 : vector<56x56xf32> to vector<56x56xbf16>
    %c0_11 = arith.constant 0 : index
    %c0_12 = arith.constant 0 : index
    %c0_13 = arith.constant 0 : index
    %21 = vector.load %arg4[%c0_11, %c0_12, %c0_13] : memref<1x56x64xbf16, #tpu.memory_space<vmem>>, vector<1x56x64xbf16>
    %22 = vector.shape_cast %21 : vector<1x56x64xbf16> to vector<56x64xbf16>
    %cst_14 = arith.constant dense<0.000000e+00> : vector<56x64xf32>
    %23 = tpu.matmul %20, %22, %cst_14 {dimension_numbers = #tpu.dot_dimension_numbers<[1], [0], [0], [1], [0, 0, 1, 1], [], []>} : vector<56x56xbf16>, vector<56x64xbf16>, vector<56x64xf32> -> vector<56x64xf32>
    %24 = tpu.reciprocal %19 {approx = true} : vector<56x1xf32> -> vector<56x1xf32>
    %25 = vector.broadcast %24 : vector<56x1xf32> to vector<56x64xf32>
    %26 = arith.mulf %23, %25 : vector<56x64xf32>
    %c0_15 = arith.constant 0 : index
    %c0_16 = arith.constant 0 : index
    %c0_17 = arith.constant 0 : index
    %27 = vector.load %arg6[%c0_15, %c0_16, %c0_17] : memref<1x56x64xf32, #tpu.memory_space<vmem>>, vector<1x56x64xf32>
    %28 = vector.shape_cast %27 : vector<1x56x64xf32> to vector<56x64xf32>
    %29 = vector.shape_cast %26 : vector<56x64xf32> to vector<1x56x64xf32>
    tpu.vector_store %arg6[%c0_15, %c0_16, %c0_17], %29 {strides = array<i32>} : memref<1x56x64xf32, #tpu.memory_space<vmem>>, vector<1x56x64xf32>,
    return
  }
  func.func @transform_0(%arg0: i32, %arg1: i32) -> (i32, i32, i32) {
    %c0_i32 = arith.constant 0 : i32
    %c0_i32_0 = arith.constant 0 : i32
    return %arg1, %arg0, %c0_i32 : i32, i32, i32
  }
  func.func @transform_1(%arg0: i32, %arg1: i32) -> (i32, i32, i32) {
    %c0_i32 = arith.constant 0 : i32
    %c0_i32_0 = arith.constant 0 : i32
    %c0_i32_1 = arith.constant 0 : i32
    return %arg1, %c0_i32, %c0_i32_0 : i32, i32, i32
  }
  func.func @transform_2(%arg0: i32, %arg1: i32) -> (i32, i32, i32) {
    %c0_i32 = arith.constant 0 : i32
    %c0_i32_0 = arith.constant 0 : i32
    %c0_i32_1 = arith.constant 0 : i32
    return %arg1, %c0_i32, %c0_i32_0 : i32, i32, i32
  }
  func.func @transform_3(%arg0: i32, %arg1: i32) -> (i32, i32, i32) {
    %c0_i32 = arith.constant 0 : i32
    %c0_i32_0 = arith.constant 0 : i32
    %c0_i32_1 = arith.constant 0 : i32
    return %c0_i32, %arg0, %c0_i32_0 : i32, i32, i32
  }
  func.func @transform_4(%arg0: i32, %arg1: i32) -> (i32, i32, i32) {
    %c0_i32 = arith.constant 0 : i32
    %c0_i32_0 = arith.constant 0 : i32
    return %arg1, %arg0, %c0_i32 : i32, i32, i32
  }
}

</mosaic_0001>

<llo_original>
// kernel: tpu_custom_call.1
$region0: #{tpu_custom_call.1}
  #allocation0 [shape = 'u32[]', space=smem, size = 0x4, offset = 0x4, fixed_abs, tag = 'smem constant byte address 0x4 - core index']
  #allocation1 [shape = 'u32[72,128]{1,0:T(1,128)}', space=vmem, size = 0x9000, scoped, tag = 'internal scratch']
  %s0 = inlined_call_operand.hbm [shape: bf16[2,56,64], index: 0, kind: input, shape index: {}]
  %s1 = inlined_call_operand.hbm [shape: bf16[2,56,64], index: 1, kind: input, shape index: {}]
  %s2 = inlined_call_operand.hbm [shape: bf16[2,56,64], index: 2, kind: input, shape index: {}]
  %s3 = inlined_call_operand.hbm [shape: bf16[1,56,56], index: 3, kind: input, shape index: {}]
  %s4 = inlined_call_operand.hbm [shape: f32[2,56,64], index: 4, kind: output, shape index: {}]
  %s5 = sld [smem:[#allocation0]]
  $region65: #{tpu_custom_call.1} parent=0
    _
  %s7 = ssub.s32 1, %s5
  %s8 = scalar_select 0, %s7, %s5
  $region1: #{tpu_custom_call.1} parent=0
    #allocation2 [shape = 'u8[28672]{0}', space=vmem, size = 0x7000, scoped, tag = 'input window, operand 0']
    #allocation3 [shape = 's32[2]{0}', space=sflag, size = 0x8, scoped, tag = 'scoped memory for tpu_custom_call.1']
    #allocation4 [shape = 's32[2]{0}', space=sflag, size = 0x8, scoped, tag = 'scoped memory for tpu_custom_call.1']
    #allocation5 [shape = 'u8[28672]{0}', space=vmem, size = 0x7000, scoped, tag = 'input window, operand 1']
    #allocation6 [shape = 's32[2]{0}', space=sflag, size = 0x8, scoped, tag = 'scoped memory for tpu_custom_call.1']
    #allocation7 [shape = 'u8[28672]{0}', space=vmem, size = 0x7000, scoped, tag = 'input window, operand 2']
    #allocation8 [shape = 'u8[14336]{0}', space=vmem, size = 0x3800, scoped, tag = 'input window, operand 3, single buffered']
    #allocation9 [shape = 's32[1]{0}', space=sflag, size = 0x4, scoped, tag = 'scoped memory for tpu_custom_call.1']
    #allocation10 [shape = 'u8[57344]{0}', space=vmem, size = 0xe000, scoped, tag = 'output window, operand 0']
    %9 = vsyncpa [#allocation3], 0
    %s10 = scalar_lea.sflag [#allocation3], 1
    %11 = vsyncpa %s10, 0
    %12 = vsyncpa [#allocation6], 0
    %s13 = scalar_lea.sflag [#allocation6], 1
    %14 = vsyncpa %s13, 0
    %15 = vsyncpa [#allocation9], 0
    %16 = vsyncpa [#allocation4], 0
    %s17 = scalar_lea.sflag [#allocation4], 1
    %18 = vsyncpa %s17, 0
    loop: start=0, step=1, limit=4
    $region2: #{tpu_custom_call.1} parent=1 // loop_pre_header
      _
    $region3: #{tpu_custom_call.1} parent=1 // loop_header
      %s20 = sphi 0, %s24
      %p21 = scmp.ge.s32.totalorder %s20, 4
      %s27 = sphi 0, %s39
      %s28 = sphi 0, %s35
      %s29 = sphi 0, %s27
      %s30 = sphi 0, %s28
      %s31 = sphi 0, %s29
      %s32 = sphi 0, %s30
      %s44 = sphi 0, %s46
      %s47 = sphi 0, %s44
      %s48 = sphi 0, %s47
      %s64 = sphi 0, %s48
      %s70 = sphi 0, %s72
      %s73 = sphi 0, %s70
      %s74 = sphi 0, %s73
      %s90 = sphi 0, %s74
      %s96 = sphi 0, %s98
      %s99 = sphi 0, %s96
      %s100 = sphi 0, %s99
      %s116 = sphi 0, %s100
      %s122 = sphi 0, %s124
      %s125 = sphi 0, %s122
      %s126 = sphi 0, %s125
      %s142 = sphi 0, %s126
      %s150 = sphi 0, %s152
      %s153 = sphi 0, %s150
      %s154 = sphi 0, %s153
      %s170 = sphi 0, %s154
    $region4: #{tpu_custom_call.1} parent=1 // loop_header_branch
      %23 = sbr.rel (%p21) target = $region8
    $region5: #{tpu_custom_call.1} parent=1 // loop_body
      %s25 = ssub.s32 %s20, 1
      %s26 = ssub.s32 %s20, 2
      %s33 = sadd.s32 1, %s28
      %p34 = scmp.ge.s32.totalorder %s33, 2
      %s35 = scalar_select %p34, 0, %s33
      %s36 = sadd.s32 1, %s27
      %s37 = scalar_select %p34, %s36, %s27
      %p38 = scmp.ge.s32.totalorder %s37, 1
      %s39 = scalar_select %p38, 0, %s37
      %s40 = ssub.s32 %s28, %s35
      %s41 = ssub.s32 %s27, %s39
      %s42 = sor.u32 %s40, %s41
      %p43 = scmp.eq.s32.totalorder %s42, 0
      %s45 = sadd.s32 %s44, 1
      %s46 = scalar_select %p43, %s44, %s45
      %p49 = pneg %p43
      %p50 = scmp.eq.s32.totalorder %s20, 1
      %p51 = por %p49, %p50
      %p52 = scmp.ne.s32.totalorder %s44, %s47
      %p53 = scmp.eq.s32.totalorder %s20, 0
      %p54 = por %p52, %p53
      %p55 = scmp.ne.s32.totalorder %s44, %s47
      %p56 = scmp.eq.s32.totalorder %s25, 1
      %p57 = por %p55, %p56
      %p58 = scmp.ne.s32.totalorder %s47, %s48
      %p59 = scmp.eq.s32.totalorder %s25, 0
      %p60 = por %p58, %p59
      %p61 = scmp.ne.s32.totalorder %s47, %s48
      %p62 = scmp.eq.s32.totalorder %s26, 1
      %p63 = por %p61, %p62
      %p65 = scmp.ne.s32.totalorder %s48, %s64
      %p66 = scmp.eq.s32.totalorder %s26, 0
      %p67 = por %p65, %p66
      %s68 = ssub.s32 %s28, %s35
      %p69 = scmp.eq.s32.totalorder %s68, 0
      %s71 = sadd.s32 %s70, 1
      %s72 = scalar_select %p69, %s70, %s71
      %p75 = pneg %p69
      %p76 = scmp.eq.s32.totalorder %s20, 1
      %p77 = por %p75, %p76
      %p78 = scmp.ne.s32.totalorder %s70, %s73
      %p79 = scmp.eq.s32.totalorder %s20, 0
      %p80 = por %p78, %p79
      %p81 = scmp.ne.s32.totalorder %s70, %s73
      %p82 = scmp.eq.s32.totalorder %s25, 1
      %p83 = por %p81, %p82
      %p84 = scmp.ne.s32.totalorder %s73, %s74
      %p85 = scmp.eq.s32.totalorder %s25, 0
      %p86 = por %p84, %p85
      %p87 = scmp.ne.s32.totalorder %s73, %s74
      %p88 = scmp.eq.s32.totalorder %s26, 1
      %p89 = por %p87, %p88
      %p91 = scmp.ne.s32.totalorder %s74, %s90
      %p92 = scmp.eq.s32.totalorder %s26, 0
      %p93 = por %p91, %p92
      %s94 = ssub.s32 %s28, %s35
      %p95 = scmp.eq.s32.totalorder %s94, 0
      %s97 = sadd.s32 %s96, 1
      %s98 = scalar_select %p95, %s96, %s97
      %p101 = pneg %p95
      %p102 = scmp.eq.s32.totalorder %s20, 1
      %p103 = por %p101, %p102
      %p104 = scmp.ne.s32.totalorder %s96, %s99
      %p105 = scmp.eq.s32.totalorder %s20, 0
      %p106 = por %p104, %p105
      %p107 = scmp.ne.s32.totalorder %s96, %s99
      %p108 = scmp.eq.s32.totalorder %s25, 1
      %p109 = por %p107, %p108
      %p110 = scmp.ne.s32.totalorder %s99, %s100
      %p111 = scmp.eq.s32.totalorder %s25, 0
      %p112 = por %p110, %p111
      %p113 = scmp.ne.s32.totalorder %s99, %s100
      %p114 = scmp.eq.s32.totalorder %s26, 1
      %p115 = por %p113, %p114
      %p117 = scmp.ne.s32.totalorder %s100, %s116
      %p118 = scmp.eq.s32.totalorder %s26, 0
      %p119 = por %p117, %p118
      %s120 = ssub.s32 %s27, %s39
      %p121 = scmp.eq.s32.totalorder %s120, 0
      %s123 = sadd.s32 %s122, 1
      %s124 = scalar_select %p121, %s122, %s123
      %p127 = pneg %p121
      %p128 = scmp.eq.s32.totalorder %s20, 1
      %p129 = por %p127, %p128
      %p130 = scmp.ne.s32.totalorder %s122, %s125
      %p131 = scmp.eq.s32.totalorder %s20, 0
      %p132 = por %p130, %p131
      %p133 = scmp.ne.s32.totalorder %s122, %s125
      %p134 = scmp.eq.s32.totalorder %s25, 1
      %p135 = por %p133, %p134
      %p136 = scmp.ne.s32.totalorder %s125, %s126
      %p137 = scmp.eq.s32.totalorder %s25, 0
      %p138 = por %p136, %p137
      %p139 = scmp.ne.s32.totalorder %s125, %s126
      %p140 = scmp.eq.s32.totalorder %s26, 1
      %p141 = por %p139, %p140
      %p143 = scmp.ne.s32.totalorder %s126, %s142
      %p144 = scmp.eq.s32.totalorder %s26, 0
      %p145 = por %p143, %p144
      %s146 = ssub.s32 %s28, %s35
      %s147 = ssub.s32 %s27, %s39
      %s148 = sor.u32 %s146, %s147
      %p149 = scmp.eq.s32.totalorder %s148, 0
      %s151 = sadd.s32 %s150, 1
      %s152 = scalar_select %p149, %s150, %s151
      %p155 = pneg %p149
      %p156 = scmp.eq.s32.totalorder %s20, 1
      %p157 = por %p155, %p156
      %p158 = scmp.ne.s32.totalorder %s150, %s153
      %p159 = scmp.eq.s32.totalorder %s20, 0
      %p160 = por %p158, %p159
      %p161 = scmp.ne.s32.totalorder %s150, %s153
      %p162 = scmp.eq.s32.totalorder %s25, 1
      %p163 = por %p161, %p162
      %p164 = scmp.ne.s32.totalorder %s153, %s154
      %p165 = scmp.eq.s32.totalorder %s25, 0
      %p166 = por %p164, %p165
      %p167 = scmp.ne.s32.totalorder %s153, %s154
      %p168 = scmp.eq.s32.totalorder %s26, 1
      %p169 = por %p167, %p168
      %p171 = scmp.ne.s32.totalorder %s154, %s170
      %p172 = scmp.eq.s32.totalorder %s26, 0
      %p173 = por %p171, %p172
      %p174 = scmp.le.s32.totalorder 1, %s20
      %p175 = scmp.lt.s32.totalorder %s20, 3
      %p176 = pnand %p174, %p175
      %p177 = pneg %p176
      // Predicated region
      $region9: #{tpu_custom_call.1} parent=5 // pred_check
        _
      $region10: #{tpu_custom_call.1} parent=5 // pred_check_branch
        %179 = sbr.rel (%p176) target = $region12
      $region11: #{tpu_custom_call.1} parent=5 // pred_region
        %s180 = ssub.s32 %s20, 1
        // Predicated region
        $region13: #{tpu_custom_call.1} parent=11 // pred_check
          %p181 = pneg %p138
        $region14: #{tpu_custom_call.1} parent=11 // pred_check_branch
          %183 = sbr.rel (%p181) target = $region16
        $region15: #{tpu_custom_call.1} parent=11 // pred_region
          %s184 = smul.u32 7, %s29
          %186 = vsyncadd [#allocation9], 0
          %s187 = smul.addr %s184, 4
          %s188 = scalar_lea.hbm %s3, %s187
          %s189 = sshll.u32 %s188, 4
          %s190 = int_to_ptr.hbm [resolvable:$true] %s189
          %s191 = sshll.u32 [#allocation8], 4
          %s192 = int_to_ptr.vmem [resolvable:$true] %s191
          %197 = dma.hbm_to_vmem [thread:$0]  %s190, 448, %s192, [#allocation9], 64, 64, 4
        $region16: #{tpu_custom_call.1} parent=11 // pred_fallthru
          _
      $region12: #{tpu_custom_call.1} parent=5 // pred_fallthru
        _
      %p198 = scmp.lt.s32.totalorder %s20, 2
      // Predicated region
      $region17: #{tpu_custom_call.1} parent=5 // pred_check
        %p199 = pneg %p198
      $region18: #{tpu_custom_call.1} parent=5 // pred_check_branch
        %201 = sbr.rel (%p199) target = $region20
      $region19: #{tpu_custom_call.1} parent=5 // pred_region
        // Predicated region
        $region21: #{tpu_custom_call.1} parent=19 // pred_check
          %p202 = pneg %p54
        $region22: #{tpu_custom_call.1} parent=19 // pred_check_branch
          %204 = sbr.rel (%p202) target = $region24
        $region23: #{tpu_custom_call.1} parent=19 // pred_region
          %s205 = sand.u32 %s44, 1
          %s206 = scalar_lea.sflag [#allocation3], %s205
          %s207 = sand.u32 %s44, 1
          %s208 = smul.addr %s207, 28
          %s209 = scalar_lea.vmem [#allocation2], %s208
          %s210 = smul.u32 7, %s27
          %212 = vsyncadd %s206, 0
          %s213 = smul.addr %s28, 7
          %s214 = sadd.s32 %s210, %s213
          %s215 = smul.addr %s214, 4
          %s216 = scalar_lea.hbm %s0, %s215
          %s217 = sshll.u32 %s216, 4
          %s218 = int_to_ptr.hbm [resolvable:$true] %s217
          %s219 = sshll.u32 %s209, 4
          %s220 = int_to_ptr.vmem [resolvable:$true] %s219
          %225 = dma.hbm_to_vmem [thread:$0]  %s218, 448, %s220, %s206, 64, 64, 4
        $region24: #{tpu_custom_call.1} parent=19 // pred_fallthru
          _
        // Predicated region
        $region25: #{tpu_custom_call.1} parent=19 // pred_check
          %p226 = pneg %p80
        $region26: #{tpu_custom_call.1} parent=19 // pred_check_branch
          %228 = sbr.rel (%p226) target = $region28
        $region27: #{tpu_custom_call.1} parent=19 // pred_region
          %s229 = sand.u32 %s20, 1
          %s230 = scalar_lea.sflag [#allocation6], %s229
          %s231 = sand.u32 %s70, 1
          %s232 = smul.addr %s231, 28
          %s233 = scalar_lea.vmem [#allocation5], %s232
          %235 = vsyncadd %s230, 0
          %s236 = smul.addr %s28, 7
          %s237 = smul.addr %s236, 4
          %s238 = scalar_lea.hbm %s1, %s237
          %s239 = sshll.u32 %s238, 4
          %s240 = int_to_ptr.hbm [resolvable:$true] %s239
          %s241 = sshll.u32 %s233, 4
          %s242 = int_to_ptr.vmem [resolvable:$true] %s241
          %247 = dma.hbm_to_vmem [thread:$0]  %s240, 448, %s242, %s230, 64, 64, 4
        $region28: #{tpu_custom_call.1} parent=19 // pred_fallthru
          _
        // Predicated region
        $region29: #{tpu_custom_call.1} parent=19 // pred_check
          %p248 = pneg %p106
        $region30: #{tpu_custom_call.1} parent=19 // pred_check_branch
          %250 = sbr.rel (%p248) target = $region32
        $region31: #{tpu_custom_call.1} parent=19 // pred_region
          %s251 = sand.u32 %s20, 1
          %s252 = scalar_lea.sflag [#allocation6], %s251
          %s253 = sand.u32 %s96, 1
          %s254 = smul.addr %s253, 28
          %s255 = scalar_lea.vmem [#allocation7], %s254
          %257 = vsyncadd %s252, 0
          %s258 = smul.addr %s28, 7
          %s259 = smul.addr %s258, 4
          %s260 = scalar_lea.hbm %s2, %s259
          %s261 = sshll.u32 %s260, 4
          %s262 = int_to_ptr.hbm [resolvable:$true] %s261
          %s263 = sshll.u32 %s255, 4
          %s264 = int_to_ptr.vmem [resolvable:$true] %s263
          %269 = dma.hbm_to_vmem [thread:$0]  %s262, 448, %s264, %s252, 64, 64, 4
        $region32: #{tpu_custom_call.1} parent=19 // pred_fallthru
          _
      $region20: #{tpu_custom_call.1} parent=5 // pred_fallthru
        _
      %p270 = scmp.le.s32.totalorder 1, %s20
      %p271 = scmp.lt.s32.totalorder %s20, 3
      %p272 = pnand %p270, %p271
      %p273 = pneg %p272
      // Predicated region
      $region33: #{tpu_custom_call.1} parent=5 // pred_check
        _
      $region34: #{tpu_custom_call.1} parent=5 // pred_check_branch
        %275 = sbr.rel (%p272) target = $region36
      $region35: #{tpu_custom_call.1} parent=5 // pred_region
        %s276 = ssub.s32 %s20, 1
        %s277 = sand.u32 %s47, 1
        %s278 = scalar_lea.sflag [#allocation3], %s277
        %s279 = sand.u32 %s47, 1
        %s280 = smul.addr %s279, 28
        %s281 = scalar_lea.vmem [#allocation2], %s280
        // Predicated region
        $region37: #{tpu_custom_call.1} parent=35 // pred_check
          %p282 = pneg %p60
        $region38: #{tpu_custom_call.1} parent=35 // pred_check_branch
          %284 = sbr.rel (%p282) target = $region40
        $region39: #{tpu_custom_call.1} parent=35 // pred_region
          %286 = dma.done %s278, 448
        $region40: #{tpu_custom_call.1} parent=35 // pred_fallthru
          _
        %s287 = sand.u32 %s25, 1
        %s288 = scalar_lea.sflag [#allocation6], %s287
        %s289 = sand.u32 %s73, 1
        %s290 = smul.addr %s289, 28
        %s291 = scalar_lea.vmem [#allocation5], %s290
        // Predicated region
        $region41: #{tpu_custom_call.1} parent=35 // pred_check
          %p292 = pneg %p86
        $region42: #{tpu_custom_call.1} parent=35 // pred_check_branch
          %294 = sbr.rel (%p292) target = $region44
        $region43: #{tpu_custom_call.1} parent=35 // pred_region
          %296 = dma.done %s288, 448
        $region44: #{tpu_custom_call.1} parent=35 // pred_fallthru
          _
        %s297 = sand.u32 %s25, 1
        %s298 = scalar_lea.sflag [#allocation6], %s297
        %s299 = sand.u32 %s99, 1
        %s300 = smul.addr %s299, 28
        %s301 = scalar_lea.vmem [#allocation7], %s300
        // Predicated region
        $region45: #{tpu_custom_call.1} parent=35 // pred_check
          %p302 = pneg %p112
        $region46: #{tpu_custom_call.1} parent=35 // pred_check_branch
          %304 = sbr.rel (%p302) target = $region48
        $region47: #{tpu_custom_call.1} parent=35 // pred_region
          %306 = dma.done %s298, 448
        $region48: #{tpu_custom_call.1} parent=35 // pred_fallthru
          _
        // Predicated region
        $region49: #{tpu_custom_call.1} parent=35 // pred_check
          %p307 = pneg %p138
        $region50: #{tpu_custom_call.1} parent=35 // pred_check_branch
          %309 = sbr.rel (%p307) target = $region52
        $region51: #{tpu_custom_call.1} parent=35 // pred_region
          %311 = dma.done [#allocation9], 448
        $region52: #{tpu_custom_call.1} parent=35 // pred_fallthru
          _
        %s312 = sand.u32 %s47, 1
        %s313 = scalar_lea.sflag [#allocation3], %s312
        %s314 = sand.u32 %s47, 1
        %s315 = smul.addr %s314, 28
        %s316 = scalar_lea.vmem [#allocation2], %s315
        %p317 = pneg %p60
        %p318 = pneg %p57
        %s319 = sand.u32 %s25, 1
        %s320 = scalar_lea.sflag [#allocation6], %s319
        %s321 = sand.u32 %s73, 1
        %s322 = smul.addr %s321, 28
        %s323 = scalar_lea.vmem [#allocation5], %s322
        %p324 = pneg %p86
        %p325 = pneg %p83
        %s326 = sand.u32 %s25, 1
        %s327 = scalar_lea.sflag [#allocation6], %s326
        %s328 = sand.u32 %s99, 1
        %s329 = smul.addr %s328, 28
        %s330 = scalar_lea.vmem [#allocation7], %s329
        %p331 = pneg %p112
        %p332 = pneg %p109
        %p333 = pneg %p138
        %p334 = pneg %p135
        %p335 = pneg %p166
        %p336 = pneg %p163
        %s337 = sand.u32 %s153, 1
        %s338 = scalar_lea.sflag [#allocation4], %s337
        %s339 = sand.u32 %s153, 1
        %s340 = smul.addr %s339, 56
        %s341 = scalar_lea.vmem [#allocation10], %s340
        %s342 = smul.u32 7, %s29
        %s343 = smul.u32 7, %s29
        %s344 = smul.u32 7, %s29
        %v346 = vld [vmem:[%s281] sm:$0xf]
        %v347 = vld [vmem:[%s281 + $0x4] sm:$0xf]
        %v348 = vld [vmem:[%s281 + $0x8] sm:$0xf]
        %v349 = vld [vmem:[%s281 + $0xc] sm:$0xf]
        %v350 = vld [vmem:[%s281 + $0x10] sm:$0xf]
        %v351 = vld [vmem:[%s281 + $0x14] sm:$0xf]
        %v352 = vld [vmem:[%s281 + $0x18] sm:$0xf]
        %v353 = vunpack.c.l.bf16 %v346
        %v354 = vunpack.c.l.bf16 %v347
        %v355 = vunpack.c.l.bf16 %v348
        %v356 = vunpack.c.l.bf16 %v349
        %v357 = vunpack.c.l.bf16 %v350
        %v358 = vunpack.c.l.bf16 %v351
        %v359 = vunpack.c.l.bf16 %v352
        %v360 = vmul.f32 %v353, 0.125
        %v361 = vmul.f32 %v354, 0.125
        %v362 = vmul.f32 %v355, 0.125
        %v363 = vmul.f32 %v356, 0.125
        %v364 = vmul.f32 %v357, 0.125
        %v365 = vmul.f32 %v358, 0.125
        %v366 = vmul.f32 %v359, 0.125
        %v367 = vpack.c.bf16 %v361, %v360
        %v368 = vpack.c.bf16 %v363, %v362
        %v369 = vpack.c.bf16 %v365, %v364
        %v370 = vpack.c.bf16 %v366, %v366
        %v371 = vld [vmem:[%s291] sm:$0xf]
        %v372 = vld [vmem:[%s291 + $0x4] sm:$0xf]
        %v373 = vld [vmem:[%s291 + $0x8] sm:$0xf]
        %v374 = vld [vmem:[%s291 + $0xc] sm:$0xf]
        %v375 = vld [vmem:[%s291 + $0x10] sm:$0xf]
        %v376 = vld [vmem:[%s291 + $0x14] sm:$0xf]
        %v377 = vld [vmem:[%s291 + $0x18] sm:$0xf]
        %v378 = vld [vmem:[#allocation8] sm:$0xf]
        %v379 = vld [vmem:[#allocation8 + $0x4] sm:$0xf]
        %v380 = vld [vmem:[#allocation8 + $0x8] sm:$0xf]
        %v381 = vld [vmem:[#allocation8 + $0xc] sm:$0xf]
        %v382 = vld [vmem:[#allocation8 + $0x10] sm:$0xf]
        %v383 = vld [vmem:[#allocation8 + $0x14] sm:$0xf]
        %v384 = vld [vmem:[#allocation8 + $0x18] sm:$0xf]
        %v385 = vunpack.c.l.bf16 %v378
        %v386 = vunpack.c.l.bf16 %v379
        %v387 = vunpack.c.l.bf16 %v380
        %v388 = vunpack.c.l.bf16 %v381
        %v389 = vunpack.c.l.bf16 %v382
        %v390 = vunpack.c.l.bf16 %v383
        %v391 = vunpack.c.l.bf16 %v384
        %v399 = vunpack.c.l.b16 %v371
        %v400 = vunpack.c.l.b16 %v372
        %v401 = vunpack.c.l.b16 %v373
        %v402 = vunpack.c.l.b16 %v374
        %v403 = vunpack.c.l.b16 %v375
        %v404 = vunpack.c.l.b16 %v376
        %v405 = vunpack.c.l.b16 %v377
        %v406 = vpack.c.b16 %v400, %v399
        %v407 = vpack.c.b16 %v402, %v401
        %v408 = vpack.c.b16 %v404, %v403
        %v409 = vpack.c.b16 %v405, %v405
        %vm410 = vcmask 523264
        %v412 = vsel %vm410, %v367, 0
        %v415 = vsel %vm410, %v368, 0
        %v418 = vsel %vm410, %v369, 0
        %v421 = vsel %vm410, %v370, 0
        %v424 = vsel %vm410, %v406, 0
        %v427 = vsel %vm410, %v407, 0
        %v430 = vsel %vm410, %v408, 0
        %v433 = vsel %vm410, %v409, 0
        %435 = vmatpush.bf16.xpose.msra.mxu0 0
        %436 = vmatpush.bf16.xpose.msra.mxu0 0
        %437 = vmatpush.bf16.xpose.msra.mxu0 0
        %438 = vmatpush.bf16.xpose.msra.mxu0 0
        %439 = vmatpush.bf16.xpose.msra.mxu0 %v433
        %440 = vmatpush.bf16.xpose.msra.mxu0 %v430
        %441 = vmatpush.bf16.xpose.msra.mxu0 %v427
        %442 = vmatpush.bf16.xpose.msra.mxu0 %v424
        %443 = vmatmul.bf16.gmra.mxu0 %v412
        %v444 = vpop.f32.mrf.mxu0
        %v445 = vadd.f32 %v385, %v444
        %v446 = vpop.f32.mrf.mxu0
        %v447 = vadd.f32 %v386, %v446
        %448 = vmatmul.bf16.gmra.mxu0 %v415
        %v449 = vpop.f32.mrf.mxu0
        %v450 = vadd.f32 %v387, %v449
        %v451 = vpop.f32.mrf.mxu0
        %v452 = vadd.f32 %v388, %v451
        %453 = vmatmul.bf16.gmra.mxu0 %v418
        %v454 = vpop.f32.mrf.mxu0
        %v455 = vadd.f32 %v389, %v454
        %v456 = vpop.f32.mrf.mxu0
        %v457 = vadd.f32 %v390, %v456
        %458 = vmatmul.bf16.gmra.mxu0 %v421
        %v459 = vpop.f32.mrf.mxu0
        %v460 = vadd.f32 %v391, %v459
        %v461 = vpop.f32.mrf.mxu0
        %462 = vdwg.mxu0
        %vm463 = vcmask 457728
        %v464 = vsel %vm463, %v445, -inf
        %465 = vmax.xlane.f32.xlu0 %v464
        %v466 = vpop.xlane.xlu0 %465
        %v467 = vsel %vm463, %v447, -inf
        %468 = vmax.xlane.f32.xlu0 %v467
        %v469 = vpop.xlane.xlu0 %468
        %v470 = vsel %vm463, %v450, -inf
        %471 = vmax.xlane.f32.xlu0 %v470
        %v472 = vpop.xlane.xlu0 %471
        %v473 = vsel %vm463, %v452, -inf
        %474 = vmax.xlane.f32.xlu0 %v473
        %v475 = vpop.xlane.xlu0 %474
        %v476 = vsel %vm463, %v455, -inf
        %477 = vmax.xlane.f32.xlu0 %v476
        %v478 = vpop.xlane.xlu0 %477
        %v479 = vsel %vm463, %v457, -inf
        %480 = vmax.xlane.f32.xlu0 %v479
        %v481 = vpop.xlane.xlu0 %480
        %v482 = vsel %vm463, %v460, -inf
        %483 = vmax.xlane.f32.xlu0 %v482
        %v484 = vpop.xlane.xlu0 %483
        %v485 = vsub.f32 %v445, %v466
        %v486 = vsub.f32 %v447, %v469
        %v487 = vsub.f32 %v450, %v472
        %v488 = vsub.f32 %v452, %v475
        %v489 = vsub.f32 %v455, %v478
        %v490 = vsub.f32 %v457, %v481
        %v491 = vsub.f32 %v460, %v484
        %v492 = vmul.f32 %v485, 1.442695
        %v493 = vpow.pop %v492
        %v494 = vmul.f32 %v486, 1.442695
        %v495 = vpow.pop %v494
        %v496 = vmul.f32 %v487, 1.442695
        %v497 = vpow.pop %v496
        %v498 = vmul.f32 %v488, 1.442695
        %v499 = vpow.pop %v498
        %v500 = vmul.f32 %v489, 1.442695
        %v501 = vpow.pop %v500
        %v502 = vmul.f32 %v490, 1.442695
        %v503 = vpow.pop %v502
        %v504 = vmul.f32 %v491, 1.442695
        %v505 = vpow.pop %v504
        %v506 = vsel %vm463, %v493, 0.0
        %507 = vadd.xlane.f32.xlu0 %v506
        %v508 = vpop.xlane.xlu0 %507
        %v509 = vsel %vm463, %v495, 0.0
        %510 = vadd.xlane.f32.xlu0 %v509
        %v511 = vpop.xlane.xlu0 %510
        %v512 = vsel %vm463, %v497, 0.0
        %513 = vadd.xlane.f32.xlu0 %v512
        %v514 = vpop.xlane.xlu0 %513
        %v515 = vsel %vm463, %v499, 0.0
        %516 = vadd.xlane.f32.xlu0 %v515
        %v517 = vpop.xlane.xlu0 %516
        %v518 = vsel %vm463, %v501, 0.0
        %519 = vadd.xlane.f32.xlu0 %v518
        %v520 = vpop.xlane.xlu0 %519
        %v521 = vsel %vm463, %v503, 0.0
        %522 = vadd.xlane.f32.xlu0 %v521
        %v523 = vpop.xlane.xlu0 %522
        %v524 = vsel %vm463, %v505, 0.0
        %525 = vadd.xlane.f32.xlu0 %v524
        %v526 = vpop.xlane.xlu0 %525
        %v527 = vpack.c.bf16 %v495, %v493
        %v528 = vpack.c.bf16 %v499, %v497
        %v529 = vpack.c.bf16 %v503, %v501
        %v530 = vpack.c.bf16 %v505, %v505
        %v531 = vld [vmem:[%s301] sm:$0xf]
        %v532 = vld [vmem:[%s301 + $0x4] sm:$0xf]
        %v533 = vld [vmem:[%s301 + $0x8] sm:$0xf]
        %v534 = vld [vmem:[%s301 + $0xc] sm:$0xf]
        %v535 = vld [vmem:[%s301 + $0x10] sm:$0xf]
        %v536 = vld [vmem:[%s301 + $0x14] sm:$0xf]
        %v537 = vld [vmem:[%s301 + $0x18] sm:$0xf]
        %v545 = vunpack.c.l.b16 %v531
        %v546 = vunpack.c.l.b16 %v532
        %v547 = vunpack.c.l.b16 %v533
        %v548 = vunpack.c.l.b16 %v534
        %v549 = vunpack.c.l.b16 %v535
        %v550 = vunpack.c.l.b16 %v536
        %v551 = vunpack.c.l.b16 %v537
        %v552 = vpack.c.b16 %v546, %v545
        %v553 = vpack.c.b16 %v548, %v547
        %v554 = vpack.c.b16 %v550, %v549
        %v555 = vpack.c.b16 %v551, %v551
        %v560 = vsel %vm463, %v527, 0
        %v563 = vsel %vm463, %v528, 0
        %v566 = vsel %vm463, %v529, 0
        %v569 = vsel %vm463, %v530, 0
        %vm571 = vcmask 1043456
        %v573 = vsel %vm571, %v555, 0
        %575 = vmatpush.bf16.msra.mxu0 0
        %576 = vmatpush.bf16.msra.mxu0 0
        %577 = vmatpush.bf16.msra.mxu0 0
        %578 = vmatpush.bf16.msra.mxu0 0
        %579 = vmatpush.bf16.msra.mxu0 %v573
        %580 = vmatpush.bf16.msra.mxu0 %v554
        %581 = vmatpush.bf16.msra.mxu0 %v553
        %582 = vmatpush.bf16.msra.mxu0 %v552
        %583 = vmatmul.bf16.gmra.mxu0 %v560
        %v584 = vpop.f32.mrf.mxu0
        %v585 = vadd.f32 0.0, %v584
        %v586 = vpop.f32.mrf.mxu0
        %v587 = vadd.f32 0.0, %v586
        %588 = vmatmul.bf16.gmra.mxu0 %v563
        %v589 = vpop.f32.mrf.mxu0
        %v590 = vadd.f32 0.0, %v589
        %v591 = vpop.f32.mrf.mxu0
        %v592 = vadd.f32 0.0, %v591
        %593 = vmatmul.bf16.gmra.mxu0 %v566
        %v594 = vpop.f32.mrf.mxu0
        %v595 = vadd.f32 0.0, %v594
        %v596 = vpop.f32.mrf.mxu0
        %v597 = vadd.f32 0.0, %v596
        %598 = vmatmul.bf16.gmra.mxu0 %v569
        %v599 = vpop.f32.mrf.mxu0
        %v600 = vadd.f32 0.0, %v599
        %v601 = vpop.f32.mrf.mxu0
        %602 = vdwg.mxu0
        %v603 = vrcp.pop %v508
        %v604 = vrcp.pop %v511
        %v605 = vrcp.pop %v514
        %v606 = vrcp.pop %v517
        %v607 = vrcp.pop %v520
        %v608 = vrcp.pop %v523
        %v609 = vrcp.pop %v526
        %v610 = vmul.f32 %v585, %v603
        %v611 = vmul.f32 %v587, %v604
        %v612 = vmul.f32 %v590, %v605
        %v613 = vmul.f32 %v592, %v606
        %v614 = vmul.f32 %v595, %v607
        %v615 = vmul.f32 %v597, %v608
        %v616 = vmul.f32 %v600, %v609
        %617 = vst.msk [vmem:[%s341] sm:$0xff] %vm410, %v610
        %618 = vst.msk [vmem:[%s341 + $0x8] sm:$0xff] %vm410, %v611
        %619 = vst.msk [vmem:[%s341 + $0x10] sm:$0xff] %vm410, %v612
        %620 = vst.msk [vmem:[%s341 + $0x18] sm:$0xff] %vm410, %v613
        %621 = vst.msk [vmem:[%s341 + $0x20] sm:$0xff] %vm410, %v614
        %622 = vst.msk [vmem:[%s341 + $0x28] sm:$0xff] %vm410, %v615
        %623 = vst.msk [vmem:[%s341 + $0x30] sm:$0xff] %vm410, %v616
        %s624 = sand.u32 %s153, 1
        %s625 = scalar_lea.sflag [#allocation4], %s624
        %s626 = sand.u32 %s153, 1
        %s627 = smul.addr %s626, 56
        %s628 = scalar_lea.vmem [#allocation10], %s627
        // Predicated region
        $region53: #{tpu_custom_call.1} parent=35 // pred_check
          %p629 = pneg %p163
        $region54: #{tpu_custom_call.1} parent=35 // pred_check_branch
          %631 = sbr.rel (%p629) target = $region56
        $region55: #{tpu_custom_call.1} parent=35 // pred_region
          %s632 = smul.u32 7, %s29
          %634 = vsyncadd %s625, 0
          %s635 = smul.addr %s30, 7
          %s636 = sadd.s32 %s632, %s635
          %s637 = smul.addr %s636, 8
          %s638 = scalar_lea.hbm %s4, %s637
          %s639 = sshll.u32 %s628, 4
          %s640 = int_to_ptr.vmem [resolvable:$true] %s639
          %s641 = sshll.u32 %s638, 4
          %s642 = int_to_ptr.hbm [resolvable:$true] %s641
          %647 = dma.vmem_to_hbm [thread:$0]  %s640, 896, %s642, %s625, 128, 128, 8
        $region56: #{tpu_custom_call.1} parent=35 // pred_fallthru
          _
      $region36: #{tpu_custom_call.1} parent=5 // pred_fallthru
        _
      %p648 = scmp.le.s32.totalorder 2, %s20
      // Predicated region
      $region57: #{tpu_custom_call.1} parent=5 // pred_check
        %p649 = pneg %p648
      $region58: #{tpu_custom_call.1} parent=5 // pred_check_branch
        %651 = sbr.rel (%p649) target = $region60
      $region59: #{tpu_custom_call.1} parent=5 // pred_region
        %s652 = ssub.s32 %s20, 2
        // Predicated region
        $region61: #{tpu_custom_call.1} parent=59 // pred_check
          %p653 = pneg %p169
        $region62: #{tpu_custom_call.1} parent=59 // pred_check_branch
          %655 = sbr.rel (%p653) target = $region64
        $region63: #{tpu_custom_call.1} parent=59 // pred_region
          %s656 = sand.u32 %s154, 1
          %s657 = scalar_lea.sflag [#allocation4], %s656
          %s658 = sand.u32 %s154, 1
          %s659 = smul.addr %s658, 56
          %s660 = scalar_lea.vmem [#allocation10], %s659
          %662 = dma.done %s657, 896
        $region64: #{tpu_custom_call.1} parent=59 // pred_fallthru
          _
      $region60: #{tpu_custom_call.1} parent=5 // pred_fallthru
        _
    $region6: #{tpu_custom_call.1} parent=1 // loop_footer
      %s24 = sadd.s32 1, %s20
    $region7: #{tpu_custom_call.1} parent=1 // loop_footer_branch
      %19 = sbr.rel target = $region3
    $region8: #{tpu_custom_call.1} parent=1 // loop_exit
      _
    %663 = vsyncpa [#allocation3], 1
    %s664 = scalar_lea.sflag [#allocation3], 1
    %665 = vsyncpa %s664, 1
    %666 = vsyncpa [#allocation6], 1
    %s667 = scalar_lea.sflag [#allocation6], 1
    %668 = vsyncpa %s667, 1
    %669 = vsyncpa [#allocation9], 1
    %670 = vsyncpa [#allocation4], 1
    %s671 = scalar_lea.sflag [#allocation4], 1
    %672 = vsyncpa %s671, 1

</llo_original>
